<compile_context>
chip_gen: v7x
topology: tpu7x:2x2x1
jax: 0.10.0
libtpu: 0.0.40
codegen_flags: <defaults>
</compile_context>

<pallas_src>
import functools

import jax
import jax.numpy as jnp
from jax.experimental import pallas as pl
from jax.experimental.pallas import tpu as pltpu

EPS = 1e-5        # nn.InstanceNorm2d default eps
LANE = 128
SUB = 8
NEG_BIG = -1e30   # pre-packed into padded logit lanes -> exp() == 0 under softmax


def _round_up(n, m):
    return ((n + m - 1) // m) * m


def _device_vmem_bytes():
    """Physical VMEM of the attached TPU generation (conservative fallback)."""
    try:
        cap = getattr(pltpu.get_tpu_info(), "vmem_capacity_bytes", None)
        if cap:
            return int(cap)
    except Exception:
        pass
    return 64 * 1024 * 1024   # v7x physical VMEM (smallest of the targets)


def _choose_c_tile(C, HW):
    """Largest multiple-of-8 divisor of C whose f32 tile stays vreg-friendly."""
    if C % 8 != 0:
        return C                                   # single full-C block (allowed)
    budget_rows = max(8, (((128 * 1024) // max(4 * HW, 1)) // 8) * 8)
    best = 8
    for t in range(8, C + 1, 8):
        if C % t == 0 and t <= budget_rows:
            best = t
    return min(best, C)


def pack_flhead_params(w1, b1, w2, b2):
    """Pack FLhead linear params into two lane-dense f32 slabs (runs once at init).

    w1: [C2, C], b1: [C2], w2: [FL, C2], b2: [FL]   (PyTorch Linear layout)

    Returns:
      w1t_pad : [C, LW]        w1^T, zero-padded to LW = round_up(C2, 128) lanes.
      tail    : [LW+16, LW]    row 0        -> b1
                               rows 8..8+LW -> w2^T (rows >= C2 are zero)
                               row  8+LW    -> b2, with lanes >= FL set to -1e30
    """
    C2, C = w1.shape
    FL = w2.shape[0]
    assert FL <= LANE, "FL_num must fit in one 128-lane row"
    lw = _round_up(C2, LANE)

    w1t = jnp.zeros((C, lw), jnp.float32).at[:, :C2].set(w1.T.astype(jnp.float32))

    rows = lw + 2 * SUB
    tail = jnp.zeros((rows, lw), jnp.float32)
    tail = tail.at[0, :C2].set(b1.astype(jnp.float32))
    tail = tail.at[SUB:SUB + C2, :FL].set(w2.T.astype(jnp.float32))
    b2_row = jnp.full((lw,), NEG_BIG, jnp.float32).at[:FL].set(b2.astype(jnp.float32))
    tail = tail.at[SUB + lw, :].set(b2_row)
    return w1t, tail


def _flhead_kernel(x_ref, w1_ref, tail_ref, out_ref, h_ref, *,
                   n_tiles, lw, r_w2, r_b2, inv_hw):
    i = pl.program_id(0)

    @pl.when(i == 0)
    def _():
        h_ref[...] = jnp.zeros_like(h_ref)

    # ---- Per-channel InstanceNorm2d stats on this channel tile.
    #      Two-pass mean / (x-mean)^2 variance: no E[x^2]-E[x]^2 cancellation.
    #      (If profiling shows the 2 XLUs binding on these lane reductions, a
    #      (C_TILE, HW//128, 128) partial-sum reshape moves them onto the VPU.)
    x = x_ref[...].astype(jnp.float32)                      # [C_TILE, HW]
    mean = jnp.sum(x, axis=-1, keepdims=True) * inv_hw      # [C_TILE, 1]
    cen = x - mean
    var = jnp.sum(cen * cen, axis=-1, keepdims=True) * inv_hw
    xr = jnp.maximum(cen * jax.lax.rsqrt(var + EPS), 0.0)   # normalize + ReLU
    pooled = jnp.sum(xr, axis=-1, keepdims=True) * inv_hw   # AdaptiveAvgPool -> [C_TILE,1]

    # ---- Partial Linear(C -> C/2) on the VPU, accumulated into the resident
    #      scratch (all 8 scratch rows carry the same value so the tail matmul
    #      runs with M=8 instead of a degenerate M=1).
    h_ref[...] += jnp.sum(pooled * w1_ref[...], axis=0, keepdims=True)   # (1,LW)->(8,LW)

    # ---- Head tail, once, on the last channel tile.
    @pl.when(i == n_tiles - 1)
    def _():
        h = h_ref[...] + tail_ref[0:1, :]                   # [8, LW]   (+ b1 row)
        w2t = tail_ref[r_w2:r_w2 + lw, 0:LANE]              # [LW, 128] (zero padded)
        # Linear(C/2 -> FL) on the idle MXU; padded lanes get logit 0 here ...
        o = jnp.dot(h, w2t, preferred_element_type=jnp.float32)[0:1, :]  # [1, 128]
        # ... and -1e30 from the packed b2 row, so softmax zeroes them out.
        o = o + tail_ref[r_b2:r_b2 + 1, 0:LANE]             # [1, 128]
        m = jnp.max(o, axis=-1, keepdims=True)
        e = jnp.exp(o - m)
        denom = jnp.sum(e, axis=-1, keepdims=True)
        inv = pl.reciprocal(denom, approx=True)             # EUP
        inv = inv * (2.0 - denom * inv)                     # one Newton step -> f32
        out_ref[...] = e * inv                              # [1, 128] lane-dense row


def flhead_eval_forward(feature_list, packed_params, fl_num, *, c_tile=None):
    """Eval-mode FLhead forward.

    feature_list: list of [B, C, H, W] FL-backbone levels.
    packed_params: (w1t_pad, tail) from pack_flhead_params().
    Returns: [1, fl_num] softmax probabilities (f32).
    """
    w1t, tail = packed_params

    # feature_split(..., outputtype='lv'): last level, sample 0.
    fl_feature = feature_list[-1][0]                 # [C, H, W]
    C, H, W = fl_feature.shape
    HW = H * W
    # Keep the source dtype over the HBM->VMEM DMA; upcast to f32 in-kernel.
    x2d = fl_feature.reshape(C, HW)

    lw = w1t.shape[1]
    rows_tail = tail.shape[0]
    assert w1t.shape[0] == C and rows_tail == lw + 2 * SUB, "packed params mismatch"
    r_w2, r_b2 = SUB, SUB + lw

    if c_tile is None:
        c_tile = _choose_c_tile(C, HW)
    if C % c_tile != 0 or (c_tile % 8 != 0 and c_tile != C):
        c_tile = C                                   # fall back to one full block
    n_tiles = C // c_tile

    kernel = functools.partial(
        _flhead_kernel, n_tiles=n_tiles, lw=lw, r_w2=r_w2, r_b2=r_b2, inv_hw=1.0 / HW)

    # VMEM budget: double-buffered input tiles + constant tail slab + scratch +
    # in-kernel f32 temporaries.  Clamp against the actual device generation
    # (v5e default scoped limit 16 MiB; v7x physical VMEM 64 MiB).
    est = (2 * c_tile * HW * x2d.dtype.itemsize      # x tile, double buffered
           + 2 * c_tile * lw * 4                     # w1 tile, double buffered
           + 2 * rows_tail * lw * 4                  # tail slab
           + SUB * lw * 4 + 2 * LANE * 4             # h scratch + output
           + 3 * c_tile * HW * 4)                    # f32 working set in the body
    cap = _device_vmem_bytes()
    vmem_limit = int(min(max(est + (4 << 20), 32 << 20), 0.8 * cap))

    cost = pl.CostEstimate(
        flops=7 * C * HW + 2 * C * lw + 2 * SUB * lw * LANE,
        transcendentals=C + LANE + 1,
        bytes_accessed=C * HW * x2d.dtype.itemsize + (C + rows_tail) * lw * 4 + LANE * 4)

    probs_row = pl.pallas_call(
        kernel,
        out_shape=jax.ShapeDtypeStruct((1, LANE), jnp.float32),
        grid_spec=pltpu.PrefetchScalarGridSpec(
            num_scalar_prefetch=0,
            grid=(n_tiles,),
            in_specs=[
                pl.BlockSpec((c_tile, HW), lambda i: (i, 0)),      # feature tile
                pl.BlockSpec((c_tile, lw), lambda i: (i, 0)),      # w1^T tile
                pl.BlockSpec((rows_tail, lw), lambda i: (0, 0)),   # constant tail slab
            ],
            out_specs=pl.BlockSpec((1, LANE), lambda i: (0, 0)),
            scratch_shapes=[pltpu.VMEM((SUB, lw), jnp.float32)],   # resident h accum
        ),
        compiler_params=pltpu.CompilerParams(
            dimension_semantics=("arbitrary",),       # accumulation axis
            vmem_limit_bytes=vmem_limit),
        cost_estimate=cost,
    )(x2d, w1t, tail)

    return probs_row[:, :fl_num]                      # [1, FL_num]


def _reference(feature_list, w1, b1, w2, b2):
    x = feature_list[-1][0].astype(jnp.float32)            # [C, H, W]
    mean = jnp.mean(x, axis=(1, 2), keepdims=True)
    var = jnp.mean((x - mean) ** 2, axis=(1, 2), keepdims=True)
    xn = (x - mean) / jnp.sqrt(var + EPS)
    xr = jnp.maximum(xn, 0.0)
    pooled = jnp.mean(xr, axis=(1, 2))[None, :]            # [1, C]
    h = pooled @ w1.T + b1[None, :]
    o = h @ w2.T + b2[None, :]
    return jax.nn.softmax(o, axis=-1)


if __name__ == "__main__":
    key = jax.random.PRNGKey(0)
    B, C, H, W = 2, 32, 16, 16
    FL_NUM = 4
    n_levels = 4

    keys = jax.random.split(key, n_levels + 4)
    # FL backbone output: list of feature levels, each [B, C, H, W].
    features = [jax.random.normal(keys[i], (B, C, H, W), dtype=jnp.float32)
                for i in range(n_levels)]

    # Linear params in PyTorch layout (weight: [out, in]).  Random biases are
    # used (instead of init-time zeros) so the bias path is exercised.
    w1 = 0.01 * jax.random.normal(keys[n_levels + 0], (C // 2, C), jnp.float32)
    w2 = 0.01 * jax.random.normal(keys[n_levels + 1], (FL_NUM, C // 2), jnp.float32)
    b1 = 0.01 * jax.random.normal(keys[n_levels + 2], (C // 2,), jnp.float32)
    b2 = 0.01 * jax.random.normal(keys[n_levels + 3], (FL_NUM,), jnp.float32)

    packed = pack_flhead_params(w1, b1, w2, b2)   # one-time (init) packing

    # Force a 4-step channel grid (exercises the accumulate/finalize path) and
    # also run the auto-tiled variant.
    out_tiled = flhead_eval_forward(features, packed, FL_NUM, c_tile=8)
    out_auto = flhead_eval_forward(features, packed, FL_NUM)
    out_tiled, out_auto = jax.block_until_ready((out_tiled, out_auto))

    ref = _reference(features, w1, b1, w2, b2)
    assert out_tiled.shape == (1, FL_NUM)
    assert jnp.allclose(out_tiled, ref, atol=1e-5, rtol=1e-4), (out_tiled, ref)
    assert jnp.allclose(out_auto, ref, atol=1e-5, rtol=1e-4), (out_auto, ref)
    print("KERNEL_OK")
</pallas_src>

<mosaic_0001>
module attributes {stable_mosaic.version = 11 : i64} {
  func.func @_flhead_kernel(%arg0: i32, %arg1: memref<8x256xf32, #tpu.memory_space<vmem>>, %arg2: memref<8x128xf32, #tpu.memory_space<vmem>>, %arg3: memref<144x128xf32, #tpu.memory_space<vmem>>, %arg4: memref<1x128xf32, #tpu.memory_space<vmem>>, %arg5: memref<8x128xf32, #tpu.memory_space<vmem>>) attributes {dimension_semantics = [#tpu.dimension_semantics<arbitrary>], iteration_bounds = array<i64: 4>, scalar_prefetch = 0 : i64, scratch_operands = 1 : i64, tpu.core_type = #tpu.core_type<tc>, window_params = [{transform_indices = @transform_0, window_bounds = array<i64: 8, 256>}, {transform_indices = @transform_1, window_bounds = array<i64: 8, 128>}, {pipeline_mode = #tpu.pipeline_mode<synchronous>, transform_indices = @transform_2, window_bounds = array<i64: 144, 128>}, {pipeline_mode = #tpu.pipeline_mode<synchronous>, transform_indices = @transform_3, window_bounds = array<i64: 1, 128>}]} {
    %c0_i32 = arith.constant 0 : i32
    %0 = arith.cmpi eq, %arg0, %c0_i32 : i32
    %1 = arith.extui %0 : i1 to i32
    %c0_i32_0 = arith.constant 0 : i32
    %2 = arith.cmpi ne, %1, %c0_i32_0 : i32
    scf.if %2 {
      %cst_17 = arith.constant 0.000000e+00 : f32
      %38 = vector.broadcast %cst_17 : f32 to vector<8x128xf32>
      %c0_18 = arith.constant 0 : index
      %c0_19 = arith.constant 0 : index
      %39 = vector.load %arg5[%c0_18, %c0_19] : memref<8x128xf32, #tpu.memory_space<vmem>>, vector<8x128xf32>
      tpu.vector_store %arg5[%c0_18, %c0_19], %38 {strides = array<i32>} : memref<8x128xf32, #tpu.memory_space<vmem>>, vector<8x128xf32>,
    } else {
    }
    %c0 = arith.constant 0 : index
    %c0_1 = arith.constant 0 : index
    %3 = vector.load %arg1[%c0, %c0_1] : memref<8x256xf32, #tpu.memory_space<vmem>>, vector<8x256xf32>
    %cst = arith.constant dense<0.000000e+00> : vector<8xf32>
    %4 = vector.multi_reduction <add>, %3, %cst [1] : vector<8x256xf32> to vector<8xf32>
    %5 = vector.shape_cast %4 : vector<8xf32> to vector<8x1xf32>
    %cst_2 = arith.constant 3.906250e-03 : f32
    %6 = vector.broadcast %cst_2 : f32 to vector<8x1xf32>
    %7 = arith.mulf %5, %6 : vector<8x1xf32>
    %8 = vector.broadcast %7 : vector<8x1xf32> to vector<8x256xf32>
    %9 = arith.subf %3, %8 : vector<8x256xf32>
    %10 = arith.mulf %9, %9 : vector<8x256xf32>
    %cst_3 = arith.constant dense<0.000000e+00> : vector<8xf32>
    %11 = vector.multi_reduction <add>, %10, %cst_3 [1] : vector<8x256xf32> to vector<8xf32>
    %12 = vector.shape_cast %11 : vector<8xf32> to vector<8x1xf32>
    %cst_4 = arith.constant 3.906250e-03 : f32
    %13 = vector.broadcast %cst_4 : f32 to vector<8x1xf32>
    %14 = arith.mulf %12, %13 : vector<8x1xf32>
    %cst_5 = arith.constant 9.99999974E-6 : f32
    %15 = vector.broadcast %cst_5 : f32 to vector<8x1xf32>
    %16 = arith.addf %14, %15 : vector<8x1xf32>
    %17 = math.rsqrt %16 : vector<8x1xf32>
    %18 = vector.broadcast %17 : vector<8x1xf32> to vector<8x256xf32>
    %19 = arith.mulf %9, %18 : vector<8x256xf32>
    %cst_6 = arith.constant 0.000000e+00 : f32
    %20 = vector.broadcast %cst_6 : f32 to vector<8x256xf32>
    %21 = arith.maximumf %19, %20 : vector<8x256xf32>
    %cst_7 = arith.constant dense<0.000000e+00> : vector<8xf32>
    %22 = vector.multi_reduction <add>, %21, %cst_7 [1] : vector<8x256xf32> to vector<8xf32>
    %23 = vector.shape_cast %22 : vector<8xf32> to vector<8x1xf32>
    %cst_8 = arith.constant 3.906250e-03 : f32
    %24 = vector.broadcast %cst_8 : f32 to vector<8x1xf32>
    %25 = arith.mulf %23, %24 : vector<8x1xf32>
    %c0_9 = arith.constant 0 : index
    %c0_10 = arith.constant 0 : index
    %26 = vector.load %arg5[%c0_9, %c0_10] : memref<8x128xf32, #tpu.memory_space<vmem>>, vector<8x128xf32>
    %c0_11 = arith.constant 0 : index
    %c0_12 = arith.constant 0 : index
    %27 = vector.load %arg2[%c0_11, %c0_12] : memref<8x128xf32, #tpu.memory_space<vmem>>, vector<8x128xf32>
    %28 = vector.broadcast %25 : vector<8x1xf32> to vector<8x128xf32>
    %29 = arith.mulf %28, %27 : vector<8x128xf32>
    %cst_13 = arith.constant dense<0.000000e+00> : vector<128xf32>
    %30 = vector.multi_reduction <add>, %29, %cst_13 [0] : vector<8x128xf32> to vector<128xf32>
    %31 = vector.shape_cast %30 : vector<128xf32> to vector<1x128xf32>
    %32 = vector.broadcast %31 : vector<1x128xf32> to vector<8x128xf32>
    %33 = arith.addf %26, %32 : vector<8x128xf32>
    %c0_14 = arith.constant 0 : index
    %c0_15 = arith.constant 0 : index
    %34 = vector.load %arg5[%c0_14, %c0_15] : memref<8x128xf32, #tpu.memory_space<vmem>>, vector<8x128xf32>
    tpu.vector_store %arg5[%c0_14, %c0_15], %33 {strides = array<i32>} : memref<8x128xf32, #tpu.memory_space<vmem>>, vector<8x128xf32>,
    %c3_i32 = arith.constant 3 : i32
    %35 = arith.cmpi eq, %arg0, %c3_i32 : i32
    %36 = arith.extui %35 : i1 to i32
    %c0_i32_16 = arith.constant 0 : i32
    %37 = arith.cmpi ne, %36, %c0_i32_16 : i32
    scf.if %37 {
      %c0_17 = arith.constant 0 : index
      %c0_18 = arith.constant 0 : index
      %38 = vector.load %arg5[%c0_17, %c0_18] : memref<8x128xf32, #tpu.memory_space<vmem>>, vector<8x128xf32>
      %c0_19 = arith.constant 0 : index
      %c0_20 = arith.constant 0 : index
      %39 = vector.load %arg3[%c0_19, %c0_20] : memref<144x128xf32, #tpu.memory_space<vmem>>, vector<1x128xf32>
      %40 = vector.broadcast %39 : vector<1x128xf32> to vector<8x128xf32>
      %41 = arith.addf %38, %40 : vector<8x128xf32>
      %c8 = arith.constant 8 : index
      %c0_21 = arith.constant 0 : index
      %42 = vector.load %arg3[%c8, %c0_21] : memref<144x128xf32, #tpu.memory_space<vmem>>, vector<128x128xf32>
      %cst_22 = arith.constant dense<0.000000e+00> : vector<8x128xf32>
      %43 = tpu.matmul %41, %42, %cst_22 {dimension_numbers = #tpu.dot_dimension_numbers<[1], [0], [0], [1], [0, 0, 1, 1], [], []>} : vector<8x128xf32>, vector<128x128xf32>, vector<8x128xf32> -> vector<8x128xf32>
      %44 = vector.extract_strided_slice %43 {offsets = [0, 0], sizes = [1, 128], strides = [1, 1]} : vector<8x128xf32> to vector<1x128xf32>
      %c136 = arith.constant 136 : index
      %c0_23 = arith.constant 0 : index
      %45 = vector.load %arg3[%c136, %c0_23] : memref<144x128xf32, #tpu.memory_space<vmem>>, vector<1x128xf32>
      %46 = arith.addf %44, %45 : vector<1x128xf32>
      %cst_24 = arith.constant dense<0xFF800000> : vector<1xf32>
      %47 = vector.multi_reduction <maximumf>, %46, %cst_24 [1] : vector<1x128xf32> to vector<1xf32>
      %48 = vector.shape_cast %47 : vector<1xf32> to vector<1x1xf32>
      %49 = vector.broadcast %48 : vector<1x1xf32> to vector<1x128xf32>
      %50 = arith.subf %46, %49 : vector<1x128xf32>
      %51 = math.exp %50 : vector<1x128xf32>
      %cst_25 = arith.constant dense<0.000000e+00> : vector<1xf32>
      %52 = vector.multi_reduction <add>, %51, %cst_25 [1] : vector<1x128xf32> to vector<1xf32>
      %53 = vector.shape_cast %52 : vector<1xf32> to vector<1x1xf32>
      %54 = tpu.reciprocal %53 {approx = true} : vector<1x1xf32> -> vector<1x1xf32>
      %55 = arith.mulf %53, %54 : vector<1x1xf32>
      %cst_26 = arith.constant 2.000000e+00 : f32
      %56 = vector.broadcast %cst_26 : f32 to vector<1x1xf32>
      %57 = arith.subf %56, %55 : vector<1x1xf32>
      %58 = arith.mulf %54, %57 : vector<1x1xf32>
      %59 = vector.broadcast %58 : vector<1x1xf32> to vector<1x128xf32>
      %60 = arith.mulf %51, %59 : vector<1x128xf32>
      %c0_27 = arith.constant 0 : index
      %c0_28 = arith.constant 0 : index
      %61 = vector.load %arg4[%c0_27, %c0_28] : memref<1x128xf32, #tpu.memory_space<vmem>>, vector<1x128xf32>
      tpu.vector_store %arg4[%c0_27, %c0_28], %60 {strides = array<i32>} : memref<1x128xf32, #tpu.memory_space<vmem>>, vector<1x128xf32>,
    } else {
    }
    return
  }
  func.func @transform_0(%arg0: i32) -> (i32, i32) {
    %c0_i32 = arith.constant 0 : i32
    %c0_i32_0 = arith.constant 0 : i32
    return %arg0, %c0_i32 : i32, i32
  }
  func.func @transform_1(%arg0: i32) -> (i32, i32) {
    %c0_i32 = arith.constant 0 : i32
    %c0_i32_0 = arith.constant 0 : i32
    return %arg0, %c0_i32 : i32, i32
  }
  func.func @transform_2(%arg0: i32) -> (i32, i32) {
    %c0_i32 = arith.constant 0 : i32
    %c0_i32_0 = arith.constant 0 : i32
    %c0_i32_1 = arith.constant 0 : i32
    return %c0_i32, %c0_i32_0 : i32, i32
  }
  func.func @transform_3(%arg0: i32) -> (i32, i32) {
    %c0_i32 = arith.constant 0 : i32
    %c0_i32_0 = arith.constant 0 : i32
    %c0_i32_1 = arith.constant 0 : i32
    return %c0_i32, %c0_i32_0 : i32, i32
  }
}

</mosaic_0001>

<llo_original>
// kernel: tpu_custom_call.1
$region0: #{tpu_custom_call.1}
  #allocation0 [shape = 'u32[]', space=smem, size = 0x4, offset = 0x4, fixed_abs, tag = 'smem constant byte address 0x4 - core index']
  #allocation1 [shape = 'u32[144,128]{1,0:T(1,128)}', space=vmem, size = 0x12000, scoped, tag = 'internal scratch']
  #allocation2 [shape = 'f32[8,128]{1,0:T(8,128)}', space=vmem, size = 0x1000, scoped, tag = 'scratch operand']
  %s0 = inlined_call_operand.hbm [shape: f32[32,256], index: 0, kind: input, shape index: {}]
  %s1 = inlined_call_operand.hbm [shape: f32[32,128], index: 1, kind: input, shape index: {}]
  %s2 = inlined_call_operand.hbm [shape: f32[144,128], index: 2, kind: input, shape index: {}]
  %s3 = inlined_call_operand.hbm [shape: f32[1,128], index: 3, kind: output, shape index: {}]
  %s4 = sld [smem:[#allocation0]]
  $region65: #{tpu_custom_call.1} parent=0
    _
  %s6 = ssub.s32 1, %s4
  %s7 = scalar_select 0, %s6, %s4
  $region1: #{tpu_custom_call.1} parent=0
    #allocation3 [shape = 'u8[16384]{0}', space=vmem, size = 0x4000, scoped, tag = 'input window, operand 0']
    #allocation4 [shape = 's32[2]{0}', space=sflag, size = 0x8, scoped, tag = 'scoped memory for tpu_custom_call.1']
    #allocation5 [shape = 's32[2]{0}', space=sflag, size = 0x8, scoped, tag = 'scoped memory for tpu_custom_call.1']
    #allocation6 [shape = 'u8[8192]{0}', space=vmem, size = 0x2000, scoped, tag = 'input window, operand 1']
    #allocation7 [shape = 's32[2]{0}', space=sflag, size = 0x8, scoped, tag = 'scoped memory for tpu_custom_call.1']
    #allocation8 [shape = 'u8[73728]{0}', space=vmem, size = 0x12000, scoped, tag = 'input window, operand 2, single buffered']
    #allocation9 [shape = 'u8[512]{0}', space=vmem, size = 0x400, scoped, tag = 'output window, operand 0, single buffered']
    %8 = vsyncpa [#allocation4], 0
    %s9 = scalar_lea.sflag [#allocation4], 1
    %10 = vsyncpa %s9, 0
    %11 = vsyncpa [#allocation7], 0
    %s12 = scalar_lea.sflag [#allocation7], 1
    %13 = vsyncpa %s12, 0
    %14 = vsyncpa [#allocation5], 0
    loop: start=0, step=1, limit=6
    $region2: #{tpu_custom_call.1} parent=1 // loop_pre_header
      _
    $region3: #{tpu_custom_call.1} parent=1 // loop_header
      %s16 = sphi 0, %s20
      %p17 = scmp.ge.s32.totalorder %s16, 6
      %s26 = sphi 0, %s28
      %s29 = sphi 0, %s26
      %s30 = sphi 0, %s29
      %s46 = sphi 0, %s30
      %s52 = sphi 0, %s54
      %s55 = sphi 0, %s52
      %s56 = sphi 0, %s55
      %s72 = sphi 0, %s56
      %s76 = sphi 0, %s76
      %s78 = sphi 0, %s76
      %s79 = sphi 0, %s78
      %s93 = sphi 0, %s79
      %s97 = sphi 0, %s97
      %s99 = sphi 0, %s97
      %s100 = sphi 0, %s99
      %s114 = sphi 0, %s100
    $region4: #{tpu_custom_call.1} parent=1 // loop_header_branch
      %19 = sbr.rel (%p17) target = $region8
    $region5: #{tpu_custom_call.1} parent=1 // loop_body
      %s21 = ssub.s32 %s16, 1
      %s22 = ssub.s32 %s16, 2
      %s23 = sadd.s32 %s16, 1
      %s24 = ssub.s32 %s16, %s23
      %p25 = scmp.eq.s32.totalorder %s24, 0
      %s27 = sadd.s32 %s26, 1
      %s28 = scalar_select %p25, %s26, %s27
      %p31 = pneg %p25
      %p32 = scmp.eq.s32.totalorder %s16, 3
      %p33 = por %p31, %p32
      %p34 = scmp.ne.s32.totalorder %s26, %s29
      %p35 = scmp.eq.s32.totalorder %s16, 0
      %p36 = por %p34, %p35
      %p37 = scmp.ne.s32.totalorder %s26, %s29
      %p38 = scmp.eq.s32.totalorder %s21, 3
      %p39 = por %p37, %p38
      %p40 = scmp.ne.s32.totalorder %s29, %s30
      %p41 = scmp.eq.s32.totalorder %s21, 0
      %p42 = por %p40, %p41
      %p43 = scmp.ne.s32.totalorder %s29, %s30
      %p44 = scmp.eq.s32.totalorder %s22, 3
      %p45 = por %p43, %p44
      %p47 = scmp.ne.s32.totalorder %s30, %s46
      %p48 = scmp.eq.s32.totalorder %s22, 0
      %p49 = por %p47, %p48
      %s50 = ssub.s32 %s16, %s23
      %p51 = scmp.eq.s32.totalorder %s50, 0
      %s53 = sadd.s32 %s52, 1
      %s54 = scalar_select %p51, %s52, %s53
      %p57 = pneg %p51
      %p58 = scmp.eq.s32.totalorder %s16, 3
      %p59 = por %p57, %p58
      %p60 = scmp.ne.s32.totalorder %s52, %s55
      %p61 = scmp.eq.s32.totalorder %s16, 0
      %p62 = por %p60, %p61
      %p63 = scmp.ne.s32.totalorder %s52, %s55
      %p64 = scmp.eq.s32.totalorder %s21, 3
      %p65 = por %p63, %p64
      %p66 = scmp.ne.s32.totalorder %s55, %s56
      %p67 = scmp.eq.s32.totalorder %s21, 0
      %p68 = por %p66, %p67
      %p69 = scmp.ne.s32.totalorder %s55, %s56
      %p70 = scmp.eq.s32.totalorder %s22, 3
      %p71 = por %p69, %p70
      %p73 = scmp.ne.s32.totalorder %s56, %s72
      %p74 = scmp.eq.s32.totalorder %s22, 0
      %p75 = por %p73, %p74
      %s77 = sadd.s32 %s76, 1
      %p80 = scmp.eq.s32.totalorder %s16, 3
      %p81 = scmp.ne.s32.totalorder %s76, %s78
      %p82 = scmp.eq.s32.totalorder %s16, 0
      %p83 = por %p81, %p82
      %p84 = scmp.ne.s32.totalorder %s76, %s78
      %p85 = scmp.eq.s32.totalorder %s21, 3
      %p86 = por %p84, %p85
      %p87 = scmp.ne.s32.totalorder %s78, %s79
      %p88 = scmp.eq.s32.totalorder %s21, 0
      %p89 = por %p87, %p88
      %p90 = scmp.ne.s32.totalorder %s78, %s79
      %p91 = scmp.eq.s32.totalorder %s22, 3
      %p92 = por %p90, %p91
      %p94 = scmp.ne.s32.totalorder %s79, %s93
      %p95 = scmp.eq.s32.totalorder %s22, 0
      %p96 = por %p94, %p95
      %s98 = sadd.s32 %s97, 1
      %p101 = scmp.eq.s32.totalorder %s16, 3
      %p102 = scmp.ne.s32.totalorder %s97, %s99
      %p103 = scmp.eq.s32.totalorder %s16, 0
      %p104 = por %p102, %p103
      %p105 = scmp.ne.s32.totalorder %s97, %s99
      %p106 = scmp.eq.s32.totalorder %s21, 3
      %p107 = por %p105, %p106
      %p108 = scmp.ne.s32.totalorder %s99, %s100
      %p109 = scmp.eq.s32.totalorder %s21, 0
      %p110 = por %p108, %p109
      %p111 = scmp.ne.s32.totalorder %s99, %s100
      %p112 = scmp.eq.s32.totalorder %s22, 3
      %p113 = por %p111, %p112
      %p115 = scmp.ne.s32.totalorder %s100, %s114
      %p116 = scmp.eq.s32.totalorder %s22, 0
      %p117 = por %p115, %p116
      %p118 = scmp.le.s32.totalorder 1, %s16
      %p119 = scmp.lt.s32.totalorder %s16, 5
      %p120 = pnand %p118, %p119
      %p121 = pneg %p120
      // Predicated region
      $region9: #{tpu_custom_call.1} parent=5 // pred_check
        _
      $region10: #{tpu_custom_call.1} parent=5 // pred_check_branch
        %123 = sbr.rel (%p120) target = $region12
      $region11: #{tpu_custom_call.1} parent=5 // pred_region
        %s124 = ssub.s32 %s16, 1
        // Predicated region
        $region13: #{tpu_custom_call.1} parent=11 // pred_check
          %p125 = pneg %p89
        $region14: #{tpu_custom_call.1} parent=11 // pred_check_branch
          %127 = sbr.rel (%p125) target = $region16
        $region15: #{tpu_custom_call.1} parent=11 // pred_region
          %s129 = ssub.s32 2304, 2304
          %130 = vsyncadd [#allocation7], %s129
          %s131 = sshll.u32 [#allocation8], 4
          %s132 = int_to_ptr.vmem [resolvable:$true] %s131
          %137 = dma.hbm_to_vmem [thread:$0]  %s2, 2304, %s132, [#allocation7], 128, 128, 8
        $region16: #{tpu_custom_call.1} parent=11 // pred_fallthru
          _
      $region12: #{tpu_custom_call.1} parent=5 // pred_fallthru
        _
      %p138 = scmp.lt.s32.totalorder %s16, 4
      // Predicated region
      $region17: #{tpu_custom_call.1} parent=5 // pred_check
        %p139 = pneg %p138
      $region18: #{tpu_custom_call.1} parent=5 // pred_check_branch
        %141 = sbr.rel (%p139) target = $region20
      $region19: #{tpu_custom_call.1} parent=5 // pred_region
        // Predicated region
        $region21: #{tpu_custom_call.1} parent=19 // pred_check
          %p142 = pneg %p36
        $region22: #{tpu_custom_call.1} parent=19 // pred_check_branch
          %144 = sbr.rel (%p142) target = $region24
        $region23: #{tpu_custom_call.1} parent=19 // pred_region
          %s145 = sand.u32 %s26, 1
          %s146 = scalar_lea.sflag [#allocation4], %s145
          %s147 = sand.u32 %s26, 1
          %s148 = smul.addr %s147, 16
          %s149 = scalar_lea.vmem [#allocation3], %s148
          %s151 = ssub.s32 256, 256
          %152 = vsyncadd %s146, %s151
          %s153 = smul.addr %s16, 2
          %s154 = smul.addr %s153, 128
          %s155 = scalar_lea.hbm %s0, %s154
          %s157 = sshll.u32 %s149, 4
          %s158 = int_to_ptr.vmem [resolvable:$true] %s157
          %160 = dma.hbm_to_vmem [thread:$0]  %s155, 256, %s158, %s146
        $region24: #{tpu_custom_call.1} parent=19 // pred_fallthru
          _
        // Predicated region
        $region25: #{tpu_custom_call.1} parent=19 // pred_check
          %p161 = pneg %p62
        $region26: #{tpu_custom_call.1} parent=19 // pred_check_branch
          %163 = sbr.rel (%p161) target = $region28
        $region27: #{tpu_custom_call.1} parent=19 // pred_region
          %s164 = sand.u32 %s16, 1
          %s165 = scalar_lea.sflag [#allocation7], %s164
          %s166 = sand.u32 %s52, 1
          %s167 = smul.addr %s166, 8
          %s168 = scalar_lea.vmem [#allocation6], %s167
          %s170 = ssub.s32 128, 128
          %171 = vsyncadd %s165, %s170
          %s172 = smul.addr %s16, 128
          %s173 = scalar_lea.hbm %s1, %s172
          %s175 = sshll.u32 %s168, 4
          %s176 = int_to_ptr.vmem [resolvable:$true] %s175
          %178 = dma.hbm_to_vmem [thread:$0]  %s173, 128, %s176, %s165
        $region28: #{tpu_custom_call.1} parent=19 // pred_fallthru
          _
      $region20: #{tpu_custom_call.1} parent=5 // pred_fallthru
        _
      %p179 = scmp.le.s32.totalorder 1, %s16
      %p180 = scmp.lt.s32.totalorder %s16, 5
      %p181 = pnand %p179, %p180
      %p182 = pneg %p181
      // Predicated region
      $region29: #{tpu_custom_call.1} parent=5 // pred_check
        _
      $region30: #{tpu_custom_call.1} parent=5 // pred_check_branch
        %184 = sbr.rel (%p181) target = $region32
      $region31: #{tpu_custom_call.1} parent=5 // pred_region
        %s185 = ssub.s32 %s16, 1
        %s186 = sand.u32 %s29, 1
        %s187 = scalar_lea.sflag [#allocation4], %s186
        %s188 = sand.u32 %s29, 1
        %s189 = smul.addr %s188, 16
        %s190 = scalar_lea.vmem [#allocation3], %s189
        // Predicated region
        $region33: #{tpu_custom_call.1} parent=31 // pred_check
          %p191 = pneg %p42
        $region34: #{tpu_custom_call.1} parent=31 // pred_check_branch
          %193 = sbr.rel (%p191) target = $region36
        $region35: #{tpu_custom_call.1} parent=31 // pred_region
          %194 = dma.done %s187, 256
        $region36: #{tpu_custom_call.1} parent=31 // pred_fallthru
          _
        %s195 = sand.u32 %s21, 1
        %s196 = scalar_lea.sflag [#allocation7], %s195
        %s197 = sand.u32 %s55, 1
        %s198 = smul.addr %s197, 8
        %s199 = scalar_lea.vmem [#allocation6], %s198
        // Predicated region
        $region37: #{tpu_custom_call.1} parent=31 // pred_check
          %p200 = pneg %p68
        $region38: #{tpu_custom_call.1} parent=31 // pred_check_branch
          %202 = sbr.rel (%p200) target = $region40
        $region39: #{tpu_custom_call.1} parent=31 // pred_region
          %203 = dma.done %s196, 128
        $region40: #{tpu_custom_call.1} parent=31 // pred_fallthru
          _
        // Predicated region
        $region41: #{tpu_custom_call.1} parent=31 // pred_check
          %p204 = pneg %p89
        $region42: #{tpu_custom_call.1} parent=31 // pred_check_branch
          %206 = sbr.rel (%p204) target = $region44
        $region43: #{tpu_custom_call.1} parent=31 // pred_region
          %207 = dma.done [#allocation7], 2304
        $region44: #{tpu_custom_call.1} parent=31 // pred_fallthru
          _
        %s208 = sand.u32 %s29, 1
        %s209 = scalar_lea.sflag [#allocation4], %s208
        %s210 = sand.u32 %s29, 1
        %s211 = smul.addr %s210, 16
        %s212 = scalar_lea.vmem [#allocation3], %s211
        %p213 = pneg %p42
        %p214 = pneg %p39
        %s215 = sand.u32 %s21, 1
        %s216 = scalar_lea.sflag [#allocation7], %s215
        %s217 = sand.u32 %s55, 1
        %s218 = smul.addr %s217, 8
        %s219 = scalar_lea.vmem [#allocation6], %s218
        %p220 = pneg %p68
        %p221 = pneg %p65
        %p222 = pneg %p89
        %p223 = pneg %p86
        %p224 = pneg %p110
        %p225 = pneg %p107
        %p226 = scmp.eq.s32.totalorder %s21, 0
        // Predicated region
        $region45: #{tpu_custom_call.1} parent=31 // pred_check
          %p227 = pneg %p226
        $region46: #{tpu_custom_call.1} parent=31 // pred_check_branch
          %229 = sbr.rel (%p227) target = $region48
        $region47: #{tpu_custom_call.1} parent=31 // pred_region
          %230 = vst [vmem:[#allocation2] sm:$0xff] 0.0
        $region48: #{tpu_custom_call.1} parent=31 // pred_fallthru
          _
        %v231 = vld [vmem:[%s190] sm:$0xff]
        %v232 = vld [vmem:[%s190 + $0x8] sm:$0xff]
        %v233 = vadd.f32 %v231, %v232
        %234 = vadd.xlane.f32.xlu0 %v233
        %v235 = vpop.xlane.xlu0 %234
        %v236 = vmul.f32 %v235, 0.00390625
        %v237 = vsub.f32 %v231, %v236
        %v238 = vsub.f32 %v232, %v236
        %v239 = vmul.f32 %v237, %v237
        %v240 = vmul.f32 %v238, %v238
        %v241 = vadd.f32 %v239, %v240
        %242 = vadd.xlane.f32.xlu0 %v241
        %v243 = vpop.xlane.xlu0 %242
        %v244 = vmul.f32 %v243, 0.00390625
        %v245 = vadd.f32 %v244, 1e-05
        %v246 = vrsqrt.pop %v245
        %v247 = vmul.f32 %v237, %v246
        %v248 = vmul.f32 %v238, %v246
        %v249 = vmax.f32 %v247, 0.0
        %v250 = vmax.f32 %v248, 0.0
        %v251 = vadd.f32 %v249, %v250
        %252 = vadd.xlane.f32.xlu0 %v251
        %v253 = vpop.xlane.xlu0 %252
        %v254 = vmul.f32 %v253, 0.00390625
        %v255 = vld [vmem:[#allocation2] sm:$0xff]
        %v256 = vld [vmem:[%s199] sm:$0xff]
        %v257 = vmul.f32 %v254, %v256
        %v258 = vrot.slane %v257, 4
        %v259 = vadd.f32 %v257, %v258
        %v260 = vrot.slane %v259, 2
        %v261 = vadd.f32 %v259, %v260
        %v262 = vrot.slane %v261, 1
        %v263 = vadd.f32 %v261, %v262
        %v264 = vadd.f32 %v255, %v263
        %265 = vst [vmem:[#allocation2] sm:$0xff] %v264
        %p266 = scmp.eq.s32.totalorder %s21, 3
        // Predicated region
        $region49: #{tpu_custom_call.1} parent=31 // pred_check
          %p267 = pneg %p266
        $region50: #{tpu_custom_call.1} parent=31 // pred_check_branch
          %269 = sbr.rel (%p267) target = $region52
        $region51: #{tpu_custom_call.1} parent=31 // pred_region
          %v270 = vld [vmem:[#allocation2] sm:$0xff]
          %v271 = vld [vmem:[#allocation8] sm:$0x1]
          %v272 = vlaneseq
          %v273 = vshrl.u32 %v272, 7
          %v274 = vsub.s32 0, %v273
          %v275 = vrot.slane %v271, %v274
          %v276 = vadd.f32 %v270, %v275
          %v277 = vld [vmem:[#allocation8 + $0x8] sm:$0xff]
          %v278 = vld [vmem:[#allocation8 + $0x10] sm:$0xff]
          %v279 = vld [vmem:[#allocation8 + $0x18] sm:$0xff]
          %v280 = vld [vmem:[#allocation8 + $0x20] sm:$0xff]
          %v281 = vld [vmem:[#allocation8 + $0x28] sm:$0xff]
          %v282 = vld [vmem:[#allocation8 + $0x30] sm:$0xff]
          %v283 = vld [vmem:[#allocation8 + $0x38] sm:$0xff]
          %v284 = vld [vmem:[#allocation8 + $0x40] sm:$0xff]
          %v285 = vld [vmem:[#allocation8 + $0x48] sm:$0xff]
          %v286 = vld [vmem:[#allocation8 + $0x50] sm:$0xff]
          %v287 = vld [vmem:[#allocation8 + $0x58] sm:$0xff]
          %v288 = vld [vmem:[#allocation8 + $0x60] sm:$0xff]
          %v289 = vld [vmem:[#allocation8 + $0x68] sm:$0xff]
          %v290 = vld [vmem:[#allocation8 + $0x70] sm:$0xff]
          %v291 = vld [vmem:[#allocation8 + $0x78] sm:$0xff]
          %v292 = vld [vmem:[#allocation8 + $0x80] sm:$0xff]
          %293 = vmatprep.subr.mxu0 0.0
          %294 = vmatpush1.msra.mxu0 %v277
          %295 = vmatprep.subr.mxu0 0.0
          %296 = vmatpush1.msra.mxu0 %v278
          %297 = vmatprep.subr.mxu0 0.0
          %298 = vmatpush1.msra.mxu0 %v279
          %299 = vmatprep.subr.mxu0 0.0
          %300 = vmatpush1.msra.mxu0 %v280
          %301 = vmatprep.subr.mxu0 0.0
          %302 = vmatpush1.msra.mxu0 %v281
          %303 = vmatprep.subr.mxu0 0.0
          %304 = vmatpush1.msra.mxu0 %v282
          %305 = vmatprep.subr.mxu0 0.0
          %306 = vmatpush1.msra.mxu0 %v283
          %307 = vmatprep.subr.mxu0 0.0
          %308 = vmatpush1.msra.mxu0 %v284
          %309 = vmatprep.subr.mxu0 0.0
          %310 = vmatpush1.msra.mxu0 %v285
          %311 = vmatprep.subr.mxu0 0.0
          %312 = vmatpush1.msra.mxu0 %v286
          %313 = vmatprep.subr.mxu0 0.0
          %314 = vmatpush1.msra.mxu0 %v287
          %315 = vmatprep.subr.mxu0 0.0
          %316 = vmatpush1.msra.mxu0 %v288
          %317 = vmatprep.subr.mxu0 0.0
          %318 = vmatpush1.msra.mxu0 %v289
          %319 = vmatprep.subr.mxu0 0.0
          %320 = vmatpush1.msra.mxu0 %v290
          %321 = vmatprep.subr.mxu0 0.0
          %322 = vmatpush1.msra.mxu0 %v291
          %323 = vmatprep.subr.mxu0 0.0
          %324 = vmatpush1.msra.mxu0 %v292
          %325 = vmatprep.subr.mxu0 0.0
          %326 = vmatpush1.msra.mxu0 0.0
          %327 = vmatprep.subr.mxu0 0.0
          %328 = vmatpush1.msra.mxu0 0.0
          %329 = vmatprep.subr.mxu0 0.0
          %330 = vmatpush1.msra.mxu0 0.0
          %331 = vmatprep.subr.mxu0 0.0
          %332 = vmatpush1.msra.mxu0 0.0
          %333 = vmatprep.subr.mxu0 0.0
          %334 = vmatpush1.msra.mxu0 0.0
          %335 = vmatprep.subr.mxu0 0.0
          %336 = vmatpush1.msra.mxu0 0.0
          %337 = vmatprep.subr.mxu0 0.0
          %338 = vmatpush1.msra.mxu0 0.0
          %339 = vmatprep.subr.mxu0 0.0
          %340 = vmatpush1.msra.mxu0 0.0
          %341 = vmatprep.subr.mxu0 0.0
          %342 = vmatpush1.msra.mxu0 0.0
          %343 = vmatprep.subr.mxu0 0.0
          %344 = vmatpush1.msra.mxu0 0.0
          %345 = vmatprep.subr.mxu0 0.0
          %346 = vmatpush1.msra.mxu0 0.0
          %347 = vmatprep.subr.mxu0 0.0
          %348 = vmatpush1.msra.mxu0 0.0
          %349 = vmatprep.subr.mxu0 0.0
          %350 = vmatpush1.msra.mxu0 0.0
          %351 = vmatprep.subr.mxu0 0.0
          %352 = vmatpush1.msra.mxu0 0.0
          %353 = vmatprep.subr.mxu0 0.0
          %354 = vmatpush1.msra.mxu0 0.0
          %355 = vmatprep.subr.mxu0 0.0
          %356 = vmatpush1.msra.mxu0 0.0
          %357 = vmatprep.mubr.f32.mxu0 0.0
          %358 = vmatmul.mubr.f32.gmra.mrb[0].mxu0 %v276
          %v359 = vpop.f32.mrb[0].mxu0
          %v360 = vadd.f32 0.0, %v359
          %v361 = vpop.f32.mrb[0].mxu0
          %362 = vdwg.mxu0
          %v363 = vld [vmem:[#allocation8 + $0x88] sm:$0x1]
          %v364 = vadd.f32 %v360, %v363
          %vm365 = vcmask 1040384
          %v366 = vsel %vm365, %v364, -inf
          %367 = vmax.xlane.f32.xlu0 %v366
          %v368 = vpop.xlane.xlu0 %367
          %v369 = vsub.f32 %v364, %v368
          %v370 = vmul.f32 %v369, 1.442695
          %v371 = vpow.pop %v370
          %v372 = vsel %vm365, %v371, 0.0
          %373 = vadd.xlane.f32.xlu0 %v372
          %v374 = vpop.xlane.xlu0 %373
          %v375 = vrcp.pop %v374
          %v376 = vmul.f32 %v374, %v375
          %v377 = vsub.f32 2.0, %v376
          %v378 = vmul.f32 %v375, %v377
          %v379 = vmul.f32 %v371, %v378
          %380 = vst [vmem:[#allocation9] sm:$0x1] %v379
        $region52: #{tpu_custom_call.1} parent=31 // pred_fallthru
          _
        // Predicated region
        $region53: #{tpu_custom_call.1} parent=31 // pred_check
          %p381 = pneg %p107
        $region54: #{tpu_custom_call.1} parent=31 // pred_check_branch
          %383 = sbr.rel (%p381) target = $region56
        $region55: #{tpu_custom_call.1} parent=31 // pred_region
          %s385 = ssub.s32 16, 16
          %386 = vsyncadd [#allocation5], %s385
          %s388 = sshll.u32 [#allocation9], 4
          %s389 = int_to_ptr.vmem [resolvable:$true] %s388
          %391 = dma.vmem_to_hbm [thread:$0]  %s389, 16, %s3, [#allocation5]
        $region56: #{tpu_custom_call.1} parent=31 // pred_fallthru
          _
        // Predicated region
        $region57: #{tpu_custom_call.1} parent=31 // pred_check
          %p392 = pneg %p107
        $region58: #{tpu_custom_call.1} parent=31 // pred_check_branch
          %394 = sbr.rel (%p392) target = $region60
        $region59: #{tpu_custom_call.1} parent=31 // pred_region
          %395 = dma.done [#allocation5], 16
        $region60: #{tpu_custom_call.1} parent=31 // pred_fallthru
          _
      $region32: #{tpu_custom_call.1} parent=5 // pred_fallthru
        _
      %p396 = scmp.le.s32.totalorder 2, %s16
      // Predicated region
      $region61: #{tpu_custom_call.1} parent=5 // pred_check
        %p397 = pneg %p396
      $region62: #{tpu_custom_call.1} parent=5 // pred_check_branch
        %399 = sbr.rel (%p397) target = $region64
      $region63: #{tpu_custom_call.1} parent=5 // pred_region
        %s400 = ssub.s32 %s16, 2
      $region64: #{tpu_custom_call.1} parent=5 // pred_fallthru
        _
    $region6: #{tpu_custom_call.1} parent=1 // loop_footer
      %s20 = sadd.s32 1, %s16
    $region7: #{tpu_custom_call.1} parent=1 // loop_footer_branch
      %15 = sbr.rel target = $region3
    $region8: #{tpu_custom_call.1} parent=1 // loop_exit
      _
    %401 = vsyncpa [#allocation4], 1
    %s402 = scalar_lea.sflag [#allocation4], 1
    %403 = vsyncpa %s402, 1
    %404 = vsyncpa [#allocation7], 1
    %s405 = scalar_lea.sflag [#allocation7], 1
    %406 = vsyncpa %s405, 1
    %407 = vsyncpa [#allocation5], 1
    %s408 = scalar_lea.sflag [#allocation5], 1
    %409 = vsyncpa %s408, 1

</llo_original>
